<compile_context>
chip_gen: v5e
topology: v5e:2x2
jax: 0.10.0
libtpu: 0.0.40
codegen_flags: <defaults>
</compile_context>

<pallas_src>
import functools

import jax
import jax.numpy as jnp
from jax.experimental import pallas as pl
from jax.experimental.pallas import tpu as pltpu


def _round_up(v, m):
    return ((v + m - 1) // m) * m


def _cdiv(a, b):
    return (a + b - 1) // b


def _pick_vmem_limit():
    """Scoped-VMEM limit: ~60% of physical VMEM, >= 32 MiB, capped at 100 MiB."""
    try:
        cap = int(pltpu.get_tpu_info().vmem_capacity_bytes)
    except Exception:
        cap = 0
    if cap <= 0:
        cap = 64 * 1024 * 1024          # v7x-sized conservative default
    return int(max(32 * 1024 * 1024, min(int(0.6 * cap), 100 * 1024 * 1024)))


def _decomp_tiled_kernel(w_ref, xh_ref, xm_ref, unc_ref, trend_ref, *,
                         kernel_size, head_rows, threshold):
    """One (G, Ts, F) tile: circular sublane rolls + small aligned head fix."""
    K = kernel_size
    Hh = head_rows
    xm = xm_ref[...].astype(jnp.float32)                       # (G, Ts, F)

    # Circular tap sum: acc[s] = sum_d w[K-1-d] * xm[(s - d) mod Ts].
    # Each tap is an XLU roll fused into one f32 accumulator: no padded copy,
    # no unaligned full-block slices.
    acc = w_ref[K - 1] * xm
    for d in range(1, K):
        acc = acc + w_ref[K - 1 - d] * pltpu.roll(xm, shift=d, axis=1)

    unc_ref[...] = (xm - acc + threshold).astype(unc_ref.dtype)
    trend_ref[...] = (acc - threshold).astype(trend_ref.dtype)

    if K > 1:
        # Rows [0, Hh) wrapped around to this tile's tail; recompute them from
        # the halo (previous tile's last Hh rows) or, on the first tile, from
        # the replicated first timestep, and overwrite the aligned sub-block.
        t = pl.program_id(1)
        G, _, F = xm.shape
        xh = xh_ref[...].astype(jnp.float32)                    # (G, Hh, F)
        first = jnp.broadcast_to(xm[:, 0:1, :], (G, Hh, F))
        prev = jnp.where(t > 0, xh, first)
        head_src = jnp.concatenate([prev, xm[:, :Hh, :]], axis=1)  # (G, 2Hh, F)
        off0 = Hh - (K - 1)
        head = w_ref[0] * head_src[:, off0:off0 + Hh, :]
        for l in range(1, K):
            head = head + w_ref[l] * head_src[:, off0 + l:off0 + l + Hh, :]
        xm_head = xm[:, :Hh, :]
        unc_ref[:, :Hh, :] = (xm_head - head + threshold).astype(unc_ref.dtype)
        trend_ref[:, :Hh, :] = (head - threshold).astype(trend_ref.dtype)


def _decomp_small_kernel(w_ref, x_ref, unc_ref, trend_ref, *,
                         kernel_size, seq_len, threshold):
    """Tiny-sequence fallback (S < aligned K-1): direct padded tap sum."""
    K = kernel_size
    S = seq_len
    x = x_ref[...].astype(jnp.float32)                          # (1, S, F)
    G, _, F = x.shape
    if K > 1:
        front = jnp.broadcast_to(x[:, 0:1, :], (G, K - 1, F))
        xp = jnp.concatenate([front, x], axis=1)
    else:
        xp = x
    acc = w_ref[0] * xp[:, 0:S, :]
    for l in range(1, K):
        acc = acc + w_ref[l] * xp[:, l:l + S, :]
    unc_ref[...] = (x - acc + threshold).astype(unc_ref.dtype)
    trend_ref[...] = (acc - threshold).astype(trend_ref.dtype)


def _choose_tiling(B, S, F, Hh, itemsize, max_tile_s, target_block_bytes,
                   vmem_limit):
    """Pick (G, Ts): batch rows per block, sequence-tile rows (multiple of Hh)."""
    F_pad = _round_up(F, 128)           # lane padding is real VMEM / VPU cost
    # Per (batch-row x seq-row) padded element: double-buffered input (2x isz)
    # + two double-buffered outputs (4x isz) + ~5 block-sized f32 temporaries.
    per_elem = 6 * itemsize + 20
    budget = int(0.7 * vmem_limit)

    s_cap = _round_up(S, Hh)
    ts_max = min(max_tile_s, s_cap,
                 max(Hh, budget // (per_elem * F_pad)),
                 max(Hh, target_block_bytes // (4 * F_pad)))
    Ts = max(Hh, (ts_max // Hh) * Hh)

    G = 1
    for g in range(B, 0, -1):
        if (B % g == 0
                and g * Ts * F_pad * per_elem <= budget
                and g * Ts * F_pad * 4 <= target_block_bytes):
            G = g
            break

    def steps(g, ts):
        return (B // g) * _cdiv(S, ts)

    # >= 2 grid steps so both v7x TensorCores get work and the auto-pipeline
    # can overlap; prefer >= 8 steps while tiles stay >= 256 rows.
    while steps(G, Ts) < 2 and G > 1:
        G = next(g for g in range(G - 1, 0, -1) if B % g == 0)
    if steps(G, Ts) < 2 and Ts > Hh:
        Ts = max(Hh, _round_up(_cdiv(S, 2), Hh))
    while steps(G, Ts) < 8 and Ts > 256 and Ts >= 2 * Hh:
        Ts = max(Hh, _round_up(Ts // 2, Hh))
    return G, Ts


def series_decomp(x, weights, kernel_size, threshold=0.001, *,
                  max_tile_s=1024, target_block_bytes=6 << 20):
    """x: (B, S, F); weights: smoothing template, shape (K,) or (1, K).
    Returns (uncertainty, trend) exactly like the PyTorch series_decomp."""
    B, S, F = x.shape
    K = int(kernel_size)
    w = jnp.asarray(weights).reshape(-1).astype(jnp.float32)
    assert w.shape[0] == K, "weights must have kernel_size entries"

    itemsize = jnp.dtype(x.dtype).itemsize
    vmem_limit = _pick_vmem_limit()
    Hh = _round_up(max(K - 1, 1), 8)

    out_shape = (jax.ShapeDtypeStruct((B, S, F), x.dtype),
                 jax.ShapeDtypeStruct((B, S, F), x.dtype))
    cost = pl.CostEstimate(flops=2 * (K + 2) * B * S * F, transcendentals=0,
                           bytes_accessed=3 * B * S * F * itemsize)
    w_spec = pl.BlockSpec(memory_space=pltpu.MemorySpace.SMEM)

    if S < Hh:
        # Sequence shorter than the aligned window: tiny, use the direct path.
        kern = functools.partial(_decomp_small_kernel, kernel_size=K,
                                 seq_len=S, threshold=threshold)
        spec = pl.BlockSpec((1, S, F), lambda b: (b, 0, 0))
        return pl.pallas_call(
            kern, grid=(B,),
            in_specs=[w_spec, spec], out_specs=[spec, spec],
            out_shape=out_shape, cost_estimate=cost,
            compiler_params=pltpu.CompilerParams(
                dimension_semantics=("parallel",),
                vmem_limit_bytes=vmem_limit),
        )(w, x)

    G, Ts = _choose_tiling(B, S, F, Hh, itemsize, max_tile_s,
                           target_block_bytes, vmem_limit)
    hb = Ts // Hh                        # halo blocks per sequence tile
    kern = functools.partial(_decomp_tiled_kernel, kernel_size=K,
                             head_rows=Hh, threshold=threshold)

    main_spec = pl.BlockSpec((G, Ts, F), lambda b, t: (b, t, 0))
    # Last Hh rows of the previous S-tile; clamped (and ignored) at t == 0.
    halo_spec = pl.BlockSpec(
        (G, Hh, F), lambda b, t: (b, jnp.maximum(t * hb - 1, 0), 0))

    unc, trend = pl.pallas_call(
        kern, grid=(B // G, _cdiv(S, Ts)),
        in_specs=[w_spec, halo_spec, main_spec],   # x passed twice (halo+main)
        out_specs=[main_spec, main_spec],
        out_shape=out_shape, cost_estimate=cost,
        compiler_params=pltpu.CompilerParams(
            dimension_semantics=("parallel", "parallel"),
            vmem_limit_bytes=vmem_limit),
    )(w, x, x)
    return unc, trend


def _reference_series_decomp(x, weights, kernel_size, threshold=0.001):
    """Pure-JAX reference mirroring the PyTorch forward exactly."""
    B, S, F = x.shape
    w = jnp.asarray(weights).reshape(-1).astype(jnp.float32)
    if kernel_size > 1:
        front = jnp.repeat(x[:, 0:1, :], kernel_size - 1, axis=1)
        xpad = jnp.concatenate([front, x], axis=1)
    else:
        xpad = x
    trend = jnp.zeros((B, S, F), jnp.float32)
    for l in range(kernel_size):
        trend = trend + w[l] * xpad[:, l:l + S, :].astype(jnp.float32)
    x32 = x.astype(jnp.float32)
    return ((x32 - trend + threshold).astype(x.dtype),
            (trend - threshold).astype(x.dtype))


if __name__ == "__main__":
    key = jax.random.PRNGKey(0)
    k1, k2, k3, kw1, kw2 = jax.random.split(key, 5)

    # nn.Linear(kernel_size, 1, bias=False) -> weight shape (1, K).  The module
    # initialises it to 0.0; use nonzero values so the trend is nontrivial.
    K1 = 5
    w1 = 0.1 * jax.random.normal(kw1, (1, K1), dtype=jnp.float32)

    # Case 1: module-scale shapes (single S tile, head-fix covers the tile).
    x1 = jax.random.normal(k1, (2, 8, 32), dtype=jnp.float32)
    u1, t1 = series_decomp(x1, w1, K1)
    jax.block_until_ready((u1, t1))
    ru1, rt1 = _reference_series_decomp(x1, w1, K1)
    assert jnp.allclose(u1, ru1, atol=1e-5, rtol=1e-5)
    assert jnp.allclose(t1, rt1, atol=1e-5, rtol=1e-5)

    # Case 2: longer sequence with a partial last tile (200 = 3*64 + 8):
    # exercises the circular-roll path, the halo, and cdiv masking.
    x2 = jax.random.normal(k2, (2, 200, 32), dtype=jnp.float32)
    u2, t2 = series_decomp(x2, w1, K1, max_tile_s=64)
    jax.block_until_ready((u2, t2))
    ru2, rt2 = _reference_series_decomp(x2, w1, K1)
    assert jnp.allclose(u2, ru2, atol=1e-5, rtol=1e-5)
    assert jnp.allclose(t2, rt2, atol=1e-5, rtol=1e-5)

    # Case 3: wide smoothing window (K=25 -> 24-row aligned halo), batch-grouped
    # blocks, partial last tile.
    K3 = 25
    w3 = 0.05 * jax.random.normal(kw2, (1, K3), dtype=jnp.float32)
    x3 = jax.random.normal(k3, (3, 192, 16), dtype=jnp.float32)
    u3, t3 = series_decomp(x3, w3, K3, max_tile_s=72)
    jax.block_until_ready((u3, t3))
    ru3, rt3 = _reference_series_decomp(x3, w3, K3)
    assert jnp.allclose(u3, ru3, atol=1e-5, rtol=1e-5)
    assert jnp.allclose(t3, rt3, atol=1e-5, rtol=1e-5)

    print("KERNEL_OK")
</pallas_src>

<mosaic_0001>
module attributes {stable_mosaic.version = 11 : i64} {
  func.func @_decomp_tiled_kernel(%arg0: i32, %arg1: i32, %arg2: memref<5xf32, #tpu.memory_space<smem>>, %arg3: memref<1x8x32xf32, #tpu.memory_space<vmem>>, %arg4: memref<1x8x32xf32, #tpu.memory_space<vmem>>, %arg5: memref<1x8x32xf32, #tpu.memory_space<vmem>>, %arg6: memref<1x8x32xf32, #tpu.memory_space<vmem>>) attributes {dimension_semantics = [#tpu.dimension_semantics<parallel>, #tpu.dimension_semantics<parallel>], iteration_bounds = array<i64: 2, 1>, scalar_prefetch = 0 : i64, scratch_operands = 0 : i64, tpu.core_type = #tpu.core_type<tc>, window_params = [{transform_indices = @transform_0, window_bounds = array<i64: 5>}, {transform_indices = @transform_1, window_bounds = array<i64: 1, 8, 32>}, {transform_indices = @transform_2, window_bounds = array<i64: 1, 8, 32>}, {transform_indices = @transform_3, window_bounds = array<i64: 1, 8, 32>}, {transform_indices = @transform_4, window_bounds = array<i64: 1, 8, 32>}]} {
    %c0 = arith.constant 0 : index
    %c0_0 = arith.constant 0 : index
    %c0_1 = arith.constant 0 : index
    %0 = vector.load %arg4[%c0, %c0_0, %c0_1] : memref<1x8x32xf32, #tpu.memory_space<vmem>>, vector<1x8x32xf32>
    %c4 = arith.constant 4 : index
    %1 = memref.load %arg2[%c4] : memref<5xf32, #tpu.memory_space<smem>>
    %2 = vector.broadcast %1 : f32 to vector<1x8x32xf32>
    %3 = arith.mulf %2, %0 : vector<1x8x32xf32>
    %c3 = arith.constant 3 : index
    %4 = memref.load %arg2[%c3] : memref<5xf32, #tpu.memory_space<smem>>
    %c1_i32 = arith.constant 1 : i32
    %5 = tpu.dynamic_rotate %0 by %c1_i32 dim 1 : vector<1x8x32xf32>, i32 -> vector<1x8x32xf32>
    %6 = vector.broadcast %4 : f32 to vector<1x8x32xf32>
    %7 = arith.mulf %6, %5 : vector<1x8x32xf32>
    %8 = arith.addf %3, %7 : vector<1x8x32xf32>
    %c2 = arith.constant 2 : index
    %9 = memref.load %arg2[%c2] : memref<5xf32, #tpu.memory_space<smem>>
    %c2_i32 = arith.constant 2 : i32
    %10 = tpu.dynamic_rotate %0 by %c2_i32 dim 1 : vector<1x8x32xf32>, i32 -> vector<1x8x32xf32>
    %11 = vector.broadcast %9 : f32 to vector<1x8x32xf32>
    %12 = arith.mulf %11, %10 : vector<1x8x32xf32>
    %13 = arith.addf %8, %12 : vector<1x8x32xf32>
    %c1 = arith.constant 1 : index
    %14 = memref.load %arg2[%c1] : memref<5xf32, #tpu.memory_space<smem>>
    %c3_i32 = arith.constant 3 : i32
    %15 = tpu.dynamic_rotate %0 by %c3_i32 dim 1 : vector<1x8x32xf32>, i32 -> vector<1x8x32xf32>
    %16 = vector.broadcast %14 : f32 to vector<1x8x32xf32>
    %17 = arith.mulf %16, %15 : vector<1x8x32xf32>
    %18 = arith.addf %13, %17 : vector<1x8x32xf32>
    %c0_2 = arith.constant 0 : index
    %19 = memref.load %arg2[%c0_2] : memref<5xf32, #tpu.memory_space<smem>>
    %c4_i32 = arith.constant 4 : i32
    %20 = tpu.dynamic_rotate %0 by %c4_i32 dim 1 : vector<1x8x32xf32>, i32 -> vector<1x8x32xf32>
    %21 = vector.broadcast %19 : f32 to vector<1x8x32xf32>
    %22 = arith.mulf %21, %20 : vector<1x8x32xf32>
    %23 = arith.addf %18, %22 : vector<1x8x32xf32>
    %24 = arith.subf %0, %23 : vector<1x8x32xf32>
    %cst = arith.constant 1.000000e-03 : f32
    %25 = vector.broadcast %cst : f32 to vector<1x8x32xf32>
    %26 = arith.addf %24, %25 : vector<1x8x32xf32>
    %c0_3 = arith.constant 0 : index
    %c0_4 = arith.constant 0 : index
    %c0_5 = arith.constant 0 : index
    %27 = vector.load %arg5[%c0_3, %c0_4, %c0_5] : memref<1x8x32xf32, #tpu.memory_space<vmem>>, vector<1x8x32xf32>
    tpu.vector_store %arg5[%c0_3, %c0_4, %c0_5], %26 {strides = array<i32>} : memref<1x8x32xf32, #tpu.memory_space<vmem>>, vector<1x8x32xf32>,
    %cst_6 = arith.constant 1.000000e-03 : f32
    %28 = vector.broadcast %cst_6 : f32 to vector<1x8x32xf32>
    %29 = arith.subf %23, %28 : vector<1x8x32xf32>
    %c0_7 = arith.constant 0 : index
    %c0_8 = arith.constant 0 : index
    %c0_9 = arith.constant 0 : index
    %30 = vector.load %arg6[%c0_7, %c0_8, %c0_9] : memref<1x8x32xf32, #tpu.memory_space<vmem>>, vector<1x8x32xf32>
    tpu.vector_store %arg6[%c0_7, %c0_8, %c0_9], %29 {strides = array<i32>} : memref<1x8x32xf32, #tpu.memory_space<vmem>>, vector<1x8x32xf32>,
    %c0_10 = arith.constant 0 : index
    %c0_11 = arith.constant 0 : index
    %c0_12 = arith.constant 0 : index
    %31 = vector.load %arg3[%c0_10, %c0_11, %c0_12] : memref<1x8x32xf32, #tpu.memory_space<vmem>>, vector<1x8x32xf32>
    %32 = vector.extract_strided_slice %0 {offsets = [0, 0, 0], sizes = [1, 1, 32], strides = [1, 1, 1]} : vector<1x8x32xf32> to vector<1x1x32xf32>
    %33 = vector.shape_cast %32 : vector<1x1x32xf32> to vector<1x1x32xf32>
    %34 = vector.broadcast %33 : vector<1x1x32xf32> to vector<1x8x32xf32>
    %c0_i32 = arith.constant 0 : i32
    %35 = arith.cmpi sgt, %arg1, %c0_i32 : i32
    %36 = arith.select %35, %31, %34 : vector<1x8x32xf32>
    %37 = tpu.concatenate %36, %0 in 1 : vector<1x8x32xf32>, vector<1x8x32xf32> -> vector<1x16x32xf32>
    %c0_13 = arith.constant 0 : index
    %38 = memref.load %arg2[%c0_13] : memref<5xf32, #tpu.memory_space<smem>>
    %39 = vector.extract_strided_slice %37 {offsets = [0, 4, 0], sizes = [1, 8, 32], strides = [1, 1, 1]} : vector<1x16x32xf32> to vector<1x8x32xf32>
    %40 = vector.broadcast %38 : f32 to vector<1x8x32xf32>
    %41 = arith.mulf %40, %39 : vector<1x8x32xf32>
    %c1_14 = arith.constant 1 : index
    %42 = memref.load %arg2[%c1_14] : memref<5xf32, #tpu.memory_space<smem>>
    %43 = vector.extract_strided_slice %37 {offsets = [0, 5, 0], sizes = [1, 8, 32], strides = [1, 1, 1]} : vector<1x16x32xf32> to vector<1x8x32xf32>
    %44 = vector.broadcast %42 : f32 to vector<1x8x32xf32>
    %45 = arith.mulf %44, %43 : vector<1x8x32xf32>
    %46 = arith.addf %41, %45 : vector<1x8x32xf32>
    %c2_15 = arith.constant 2 : index
    %47 = memref.load %arg2[%c2_15] : memref<5xf32, #tpu.memory_space<smem>>
    %48 = vector.extract_strided_slice %37 {offsets = [0, 6, 0], sizes = [1, 8, 32], strides = [1, 1, 1]} : vector<1x16x32xf32> to vector<1x8x32xf32>
    %49 = vector.broadcast %47 : f32 to vector<1x8x32xf32>
    %50 = arith.mulf %49, %48 : vector<1x8x32xf32>
    %51 = arith.addf %46, %50 : vector<1x8x32xf32>
    %c3_16 = arith.constant 3 : index
    %52 = memref.load %arg2[%c3_16] : memref<5xf32, #tpu.memory_space<smem>>
    %53 = vector.extract_strided_slice %37 {offsets = [0, 7, 0], sizes = [1, 8, 32], strides = [1, 1, 1]} : vector<1x16x32xf32> to vector<1x8x32xf32>
    %54 = vector.broadcast %52 : f32 to vector<1x8x32xf32>
    %55 = arith.mulf %54, %53 : vector<1x8x32xf32>
    %56 = arith.addf %51, %55 : vector<1x8x32xf32>
    %c4_17 = arith.constant 4 : index
    %57 = memref.load %arg2[%c4_17] : memref<5xf32, #tpu.memory_space<smem>>
    %58 = vector.extract_strided_slice %37 {offsets = [0, 8, 0], sizes = [1, 8, 32], strides = [1, 1, 1]} : vector<1x16x32xf32> to vector<1x8x32xf32>
    %59 = vector.broadcast %57 : f32 to vector<1x8x32xf32>
    %60 = arith.mulf %59, %58 : vector<1x8x32xf32>
    %61 = arith.addf %56, %60 : vector<1x8x32xf32>
    %62 = arith.subf %0, %61 : vector<1x8x32xf32>
    %cst_18 = arith.constant 1.000000e-03 : f32
    %63 = vector.broadcast %cst_18 : f32 to vector<1x8x32xf32>
    %64 = arith.addf %62, %63 : vector<1x8x32xf32>
    %c0_19 = arith.constant 0 : index
    %c0_20 = arith.constant 0 : index
    %c0_21 = arith.constant 0 : index
    %65 = vector.load %arg5[%c0_19, %c0_20, %c0_21] : memref<1x8x32xf32, #tpu.memory_space<vmem>>, vector<1x8x32xf32>
    tpu.vector_store %arg5[%c0_19, %c0_20, %c0_21], %64 {strides = array<i32>} : memref<1x8x32xf32, #tpu.memory_space<vmem>>, vector<1x8x32xf32>,
    %cst_22 = arith.constant 1.000000e-03 : f32
    %66 = vector.broadcast %cst_22 : f32 to vector<1x8x32xf32>
    %67 = arith.subf %61, %66 : vector<1x8x32xf32>
    %c0_23 = arith.constant 0 : index
    %c0_24 = arith.constant 0 : index
    %c0_25 = arith.constant 0 : index
    %68 = vector.load %arg6[%c0_23, %c0_24, %c0_25] : memref<1x8x32xf32, #tpu.memory_space<vmem>>, vector<1x8x32xf32>
    tpu.vector_store %arg6[%c0_23, %c0_24, %c0_25], %67 {strides = array<i32>} : memref<1x8x32xf32, #tpu.memory_space<vmem>>, vector<1x8x32xf32>,
    return
  }
  func.func @transform_0(%arg0: i32, %arg1: i32) -> i32 {
    %c0_i32 = arith.constant 0 : i32
    %c0_i32_0 = arith.constant 0 : i32
    return %c0_i32 : i32
  }
  func.func @transform_1(%arg0: i32, %arg1: i32) -> (i32, i32, i32) {
    %c1_i32 = arith.constant 1 : i32
    %0 = arith.muli %arg1, %c1_i32 : i32
    %c1_i32_0 = arith.constant 1 : i32
    %1 = arith.subi %0, %c1_i32_0 : i32
    %c0_i32 = arith.constant 0 : i32
    %2 = arith.maxsi %1, %c0_i32 : i32
    %c0_i32_1 = arith.constant 0 : i32
    %c0_i32_2 = arith.constant 0 : i32
    return %arg0, %2, %c0_i32_1 : i32, i32, i32
  }
  func.func @transform_2(%arg0: i32, %arg1: i32) -> (i32, i32, i32) {
    %c0_i32 = arith.constant 0 : i32
    %c0_i32_0 = arith.constant 0 : i32
    return %arg0, %arg1, %c0_i32 : i32, i32, i32
  }
  func.func @transform_3(%arg0: i32, %arg1: i32) -> (i32, i32, i32) {
    %c0_i32 = arith.constant 0 : i32
    %c0_i32_0 = arith.constant 0 : i32
    return %arg0, %arg1, %c0_i32 : i32, i32, i32
  }
  func.func @transform_4(%arg0: i32, %arg1: i32) -> (i32, i32, i32) {
    %c0_i32 = arith.constant 0 : i32
    %c0_i32_0 = arith.constant 0 : i32
    return %arg0, %arg1, %c0_i32 : i32, i32, i32
  }
}

</mosaic_0001>

<llo_original>
// kernel: tpu_custom_call.1
$region0: #{tpu_custom_call.1}
  #allocation0 [shape = 'u32[]', space=smem, size = 0x4, offset = 0x4, fixed_abs, tag = 'smem constant byte address 0x4 - core index']
  #allocation1 [shape = 'u32[72,128]{1,0:T(1,128)}', space=vmem, size = 0x9000, scoped, tag = 'internal scratch']
  %s0 = inlined_call_operand.hbm [shape: f32[5], index: 0, kind: input, shape index: {}]
  %s1 = inlined_call_operand.hbm [shape: f32[2,8,32], index: 1, kind: input, shape index: {}]
  %s2 = inlined_call_operand.hbm [shape: f32[2,8,32], index: 2, kind: input, shape index: {}]
  %s3 = inlined_call_operand.hbm [shape: f32[2,8,32], index: 3, kind: output, shape index: {0}]
  %s4 = inlined_call_operand.hbm [shape: f32[2,8,32], index: 4, kind: output, shape index: {1}]
  %5 = xla_tuple %s3, %s4
  %s6 = sld [smem:[#allocation0]]
  $region65: #{tpu_custom_call.1} parent=0
    _
  %s8 = ssub.s32 1, %s6
  %s9 = scalar_select 0, %s8, %s6
  $region1: #{tpu_custom_call.1} parent=0
    #allocation2 [shape = 'u8[512]{0}', space=smem, size = 0x200, scoped, tag = 'input window, operand 0, single buffered']
    #allocation3 [shape = 's32[2]{0}', space=sflag, size = 0x8, scoped, tag = 'scoped memory for tpu_custom_call.1']
    #allocation4 [shape = 's32[2]{0}', space=sflag, size = 0x8, scoped, tag = 'scoped memory for tpu_custom_call.1']
    #allocation5 [shape = 's32[2]{0}', space=sflag, size = 0x8, scoped, tag = 'scoped memory for tpu_custom_call.1']
    #allocation6 [shape = 'u8[8192]{0}', space=vmem, size = 0x2000, scoped, tag = 'input window, operand 1']
    #allocation7 [shape = 'u8[8192]{0}', space=vmem, size = 0x2000, scoped, tag = 'input window, operand 2']
    #allocation8 [shape = 's32[2]{0}', space=sflag, size = 0x8, scoped, tag = 'scoped memory for tpu_custom_call.1']
    #allocation9 [shape = 'u8[8192]{0}', space=vmem, size = 0x2000, scoped, tag = 'output window, operand 0']
    #allocation10 [shape = 'u8[8192]{0}', space=vmem, size = 0x2000, scoped, tag = 'output window, operand 1']
    #allocation11 [shape = 's32[2]{0}', space=sflag, size = 0x8, scoped, tag = 'scoped memory for tpu_custom_call.1']
    %10 = vsyncpa [#allocation5], 0
    %11 = vsyncpa [#allocation3], 0
    %s12 = scalar_lea.sflag [#allocation3], 1
    %13 = vsyncpa %s12, 0
    %14 = vsyncpa [#allocation8], 0
    %s15 = scalar_lea.sflag [#allocation8], 1
    %16 = vsyncpa %s15, 0
    %17 = vsyncpa [#allocation4], 0
    %s18 = scalar_lea.sflag [#allocation4], 1
    %19 = vsyncpa %s18, 0
    %20 = vsyncpa [#allocation11], 0
    %s21 = scalar_lea.sflag [#allocation11], 1
    %22 = vsyncpa %s21, 0
    loop: start=0, step=1, limit=4
    $region2: #{tpu_custom_call.1} parent=1 // loop_pre_header
      _
    $region3: #{tpu_custom_call.1} parent=1 // loop_header
      %s24 = sphi 0, %s28
      %p25 = scmp.ge.s32.totalorder %s24, 4
      %s31 = sphi 0, %s43
      %s32 = sphi 0, %s39
      %s33 = sphi 0, %s31
      %s34 = sphi 0, %s32
      %s35 = sphi 0, %s33
      %s36 = sphi 0, %s34
      %s44 = sphi 0, %s44
      %s46 = sphi 0, %s44
      %s47 = sphi 0, %s46
      %s61 = sphi 0, %s47
      %s75 = sphi 0, %s77
      %s78 = sphi 0, %s75
      %s79 = sphi 0, %s78
      %s95 = sphi 0, %s79
      %s103 = sphi 0, %s105
      %s106 = sphi 0, %s103
      %s107 = sphi 0, %s106
      %s123 = sphi 0, %s107
      %s131 = sphi 0, %s133
      %s134 = sphi 0, %s131
      %s135 = sphi 0, %s134
      %s151 = sphi 0, %s135
      %s159 = sphi 0, %s161
      %s162 = sphi 0, %s159
      %s163 = sphi 0, %s162
      %s179 = sphi 0, %s163
    $region4: #{tpu_custom_call.1} parent=1 // loop_header_branch
      %27 = sbr.rel (%p25) target = $region8
    $region5: #{tpu_custom_call.1} parent=1 // loop_body
      %s29 = ssub.s32 %s24, 1
      %s30 = ssub.s32 %s24, 2
      %s37 = sadd.s32 1, %s32
      %p38 = scmp.ge.s32.totalorder %s37, 1
      %s39 = scalar_select %p38, 0, %s37
      %s40 = sadd.s32 1, %s31
      %s41 = scalar_select %p38, %s40, %s31
      %p42 = scmp.ge.s32.totalorder %s41, 2
      %s43 = scalar_select %p42, 0, %s41
      %s45 = sadd.s32 %s44, 1
      %p48 = scmp.eq.s32.totalorder %s24, 1
      %p49 = scmp.ne.s32.totalorder %s44, %s46
      %p50 = scmp.eq.s32.totalorder %s24, 0
      %p51 = por %p49, %p50
      %p52 = scmp.ne.s32.totalorder %s44, %s46
      %p53 = scmp.eq.s32.totalorder %s29, 1
      %p54 = por %p52, %p53
      %p55 = scmp.ne.s32.totalorder %s46, %s47
      %p56 = scmp.eq.s32.totalorder %s29, 0
      %p57 = por %p55, %p56
      %p58 = scmp.ne.s32.totalorder %s46, %s47
      %p59 = scmp.eq.s32.totalorder %s30, 1
      %p60 = por %p58, %p59
      %p62 = scmp.ne.s32.totalorder %s47, %s61
      %p63 = scmp.eq.s32.totalorder %s30, 0
      %p64 = por %p62, %p63
      %s65 = ssub.s32 %s32, 1
      %p66 = scmp.gt.s32.totalorder %s65, 0
      %s67 = scalar_select %p66, %s65, 0
      %s68 = ssub.s32 %s39, 1
      %p69 = scmp.gt.s32.totalorder %s68, 0
      %s70 = scalar_select %p69, %s68, 0
      %s71 = ssub.s32 %s31, %s43
      %s72 = ssub.s32 %s67, %s70
      %s73 = sor.u32 %s71, %s72
      %p74 = scmp.eq.s32.totalorder %s73, 0
      %s76 = sadd.s32 %s75, 1
      %s77 = scalar_select %p74, %s75, %s76
      %p80 = pneg %p74
      %p81 = scmp.eq.s32.totalorder %s24, 1
      %p82 = por %p80, %p81
      %p83 = scmp.ne.s32.totalorder %s75, %s78
      %p84 = scmp.eq.s32.totalorder %s24, 0
      %p85 = por %p83, %p84
      %p86 = scmp.ne.s32.totalorder %s75, %s78
      %p87 = scmp.eq.s32.totalorder %s29, 1
      %p88 = por %p86, %p87
      %p89 = scmp.ne.s32.totalorder %s78, %s79
      %p90 = scmp.eq.s32.totalorder %s29, 0
      %p91 = por %p89, %p90
      %p92 = scmp.ne.s32.totalorder %s78, %s79
      %p93 = scmp.eq.s32.totalorder %s30, 1
      %p94 = por %p92, %p93
      %p96 = scmp.ne.s32.totalorder %s79, %s95
      %p97 = scmp.eq.s32.totalorder %s30, 0
      %p98 = por %p96, %p97
      %s99 = ssub.s32 %s31, %s43
      %s100 = ssub.s32 %s32, %s39
      %s101 = sor.u32 %s99, %s100
      %p102 = scmp.eq.s32.totalorder %s101, 0
      %s104 = sadd.s32 %s103, 1
      %s105 = scalar_select %p102, %s103, %s104
      %p108 = pneg %p102
      %p109 = scmp.eq.s32.totalorder %s24, 1
      %p110 = por %p108, %p109
      %p111 = scmp.ne.s32.totalorder %s103, %s106
      %p112 = scmp.eq.s32.totalorder %s24, 0
      %p113 = por %p111, %p112
      %p114 = scmp.ne.s32.totalorder %s103, %s106
      %p115 = scmp.eq.s32.totalorder %s29, 1
      %p116 = por %p114, %p115
      %p117 = scmp.ne.s32.totalorder %s106, %s107
      %p118 = scmp.eq.s32.totalorder %s29, 0
      %p119 = por %p117, %p118
      %p120 = scmp.ne.s32.totalorder %s106, %s107
      %p121 = scmp.eq.s32.totalorder %s30, 1
      %p122 = por %p120, %p121
      %p124 = scmp.ne.s32.totalorder %s107, %s123
      %p125 = scmp.eq.s32.totalorder %s30, 0
      %p126 = por %p124, %p125
      %s127 = ssub.s32 %s31, %s43
      %s128 = ssub.s32 %s32, %s39
      %s129 = sor.u32 %s127, %s128
      %p130 = scmp.eq.s32.totalorder %s129, 0
      %s132 = sadd.s32 %s131, 1
      %s133 = scalar_select %p130, %s131, %s132
      %p136 = pneg %p130
      %p137 = scmp.eq.s32.totalorder %s24, 1
      %p138 = por %p136, %p137
      %p139 = scmp.ne.s32.totalorder %s131, %s134
      %p140 = scmp.eq.s32.totalorder %s24, 0
      %p141 = por %p139, %p140
      %p142 = scmp.ne.s32.totalorder %s131, %s134
      %p143 = scmp.eq.s32.totalorder %s29, 1
      %p144 = por %p142, %p143
      %p145 = scmp.ne.s32.totalorder %s134, %s135
      %p146 = scmp.eq.s32.totalorder %s29, 0
      %p147 = por %p145, %p146
      %p148 = scmp.ne.s32.totalorder %s134, %s135
      %p149 = scmp.eq.s32.totalorder %s30, 1
      %p150 = por %p148, %p149
      %p152 = scmp.ne.s32.totalorder %s135, %s151
      %p153 = scmp.eq.s32.totalorder %s30, 0
      %p154 = por %p152, %p153
      %s155 = ssub.s32 %s31, %s43
      %s156 = ssub.s32 %s32, %s39
      %s157 = sor.u32 %s155, %s156
      %p158 = scmp.eq.s32.totalorder %s157, 0
      %s160 = sadd.s32 %s159, 1
      %s161 = scalar_select %p158, %s159, %s160
      %p164 = pneg %p158
      %p165 = scmp.eq.s32.totalorder %s24, 1
      %p166 = por %p164, %p165
      %p167 = scmp.ne.s32.totalorder %s159, %s162
      %p168 = scmp.eq.s32.totalorder %s24, 0
      %p169 = por %p167, %p168
      %p170 = scmp.ne.s32.totalorder %s159, %s162
      %p171 = scmp.eq.s32.totalorder %s29, 1
      %p172 = por %p170, %p171
      %p173 = scmp.ne.s32.totalorder %s162, %s163
      %p174 = scmp.eq.s32.totalorder %s29, 0
      %p175 = por %p173, %p174
      %p176 = scmp.ne.s32.totalorder %s162, %s163
      %p177 = scmp.eq.s32.totalorder %s30, 1
      %p178 = por %p176, %p177
      %p180 = scmp.ne.s32.totalorder %s163, %s179
      %p181 = scmp.eq.s32.totalorder %s30, 0
      %p182 = por %p180, %p181
      %p183 = scmp.le.s32.totalorder 1, %s24
      %p184 = scmp.lt.s32.totalorder %s24, 3
      %p185 = pnand %p183, %p184
      %p186 = pneg %p185
      // Predicated region
      $region9: #{tpu_custom_call.1} parent=5 // pred_check
        _
      $region10: #{tpu_custom_call.1} parent=5 // pred_check_branch
        %188 = sbr.rel (%p185) target = $region12
      $region11: #{tpu_custom_call.1} parent=5 // pred_region
        %s189 = ssub.s32 %s24, 1
        // Predicated region
        $region13: #{tpu_custom_call.1} parent=11 // pred_check
          %p190 = pneg %p57
        $region14: #{tpu_custom_call.1} parent=11 // pred_check_branch
          %192 = sbr.rel (%p190) target = $region16
        $region15: #{tpu_custom_call.1} parent=11 // pred_region
          %194 = vsyncadd [#allocation5], 0
          %s196 = sshll.u32 %s0, 4
          %s197 = int_to_ptr.hbm [resolvable:$true] %s196
          %199 = dma.hbm_to_smem %s197, 16, [#allocation2], [#allocation5]
        $region16: #{tpu_custom_call.1} parent=11 // pred_fallthru
          _
      $region12: #{tpu_custom_call.1} parent=5 // pred_fallthru
        _
      %p200 = scmp.lt.s32.totalorder %s24, 2
      // Predicated region
      $region17: #{tpu_custom_call.1} parent=5 // pred_check
        %p201 = pneg %p200
      $region18: #{tpu_custom_call.1} parent=5 // pred_check_branch
        %203 = sbr.rel (%p201) target = $region20
      $region19: #{tpu_custom_call.1} parent=5 // pred_region
        // Predicated region
        $region21: #{tpu_custom_call.1} parent=19 // pred_check
          %p204 = pneg %p85
        $region22: #{tpu_custom_call.1} parent=19 // pred_check_branch
          %206 = sbr.rel (%p204) target = $region24
        $region23: #{tpu_custom_call.1} parent=19 // pred_region
          %s207 = sand.u32 %s75, 1
          %s208 = scalar_lea.sflag [#allocation3], %s207
          %s209 = sand.u32 %s75, 1
          %s210 = smul.addr %s209, 8
          %s211 = scalar_lea.vmem [#allocation6], %s210
          %s212 = ssub.s32 %s32, 1
          %p213 = scmp.gt.s32.totalorder %s212, 0
          %s214 = scalar_select %p213, %s212, 0
          %216 = vsyncadd %s208, 0
          %s217 = sadd.s32 %s214, %s31
          %s218 = smul.addr %s217, 8
          %s219 = scalar_lea.hbm %s1, %s218
          %s221 = sshll.u32 %s219, 4
          %s222 = int_to_ptr.hbm [resolvable:$true] %s221
          %s223 = sshll.u32 %s211, 4
          %s224 = int_to_ptr.vmem [resolvable:$true] %s223
          %226 = dma.hbm_to_vmem [thread:$0]  %s222, 128, %s224, %s208
        $region24: #{tpu_custom_call.1} parent=19 // pred_fallthru
          _
        // Predicated region
        $region25: #{tpu_custom_call.1} parent=19 // pred_check
          %p227 = pneg %p113
        $region26: #{tpu_custom_call.1} parent=19 // pred_check_branch
          %229 = sbr.rel (%p227) target = $region28
        $region27: #{tpu_custom_call.1} parent=19 // pred_region
          %s230 = sand.u32 %s103, 1
          %s231 = scalar_lea.sflag [#allocation8], %s230
          %s232 = sand.u32 %s103, 1
          %s233 = smul.addr %s232, 8
          %s234 = scalar_lea.vmem [#allocation7], %s233
          %236 = vsyncadd %s231, 0
          %s237 = sadd.s32 %s32, %s31
          %s238 = smul.addr %s237, 8
          %s239 = scalar_lea.hbm %s2, %s238
          %s241 = sshll.u32 %s239, 4
          %s242 = int_to_ptr.hbm [resolvable:$true] %s241
          %s243 = sshll.u32 %s234, 4
          %s244 = int_to_ptr.vmem [resolvable:$true] %s243
          %246 = dma.hbm_to_vmem [thread:$0]  %s242, 128, %s244, %s231
        $region28: #{tpu_custom_call.1} parent=19 // pred_fallthru
          _
      $region20: #{tpu_custom_call.1} parent=5 // pred_fallthru
        _
      %p247 = scmp.le.s32.totalorder 1, %s24
      %p248 = scmp.lt.s32.totalorder %s24, 3
      %p249 = pnand %p247, %p248
      %p250 = pneg %p249
      // Predicated region
      $region29: #{tpu_custom_call.1} parent=5 // pred_check
        _
      $region30: #{tpu_custom_call.1} parent=5 // pred_check_branch
        %252 = sbr.rel (%p249) target = $region32
      $region31: #{tpu_custom_call.1} parent=5 // pred_region
        %s253 = ssub.s32 %s24, 1
        // Predicated region
        $region33: #{tpu_custom_call.1} parent=31 // pred_check
          %p254 = pneg %p57
        $region34: #{tpu_custom_call.1} parent=31 // pred_check_branch
          %256 = sbr.rel (%p254) target = $region36
        $region35: #{tpu_custom_call.1} parent=31 // pred_region
          %258 = dma.done [#allocation5], 16
        $region36: #{tpu_custom_call.1} parent=31 // pred_fallthru
          _
        %s259 = sand.u32 %s78, 1
        %s260 = scalar_lea.sflag [#allocation3], %s259
        %s261 = sand.u32 %s78, 1
        %s262 = smul.addr %s261, 8
        %s263 = scalar_lea.vmem [#allocation6], %s262
        // Predicated region
        $region37: #{tpu_custom_call.1} parent=31 // pred_check
          %p264 = pneg %p91
        $region38: #{tpu_custom_call.1} parent=31 // pred_check_branch
          %266 = sbr.rel (%p264) target = $region40
        $region39: #{tpu_custom_call.1} parent=31 // pred_region
          %268 = dma.done %s260, 128
        $region40: #{tpu_custom_call.1} parent=31 // pred_fallthru
          _
        %s269 = sand.u32 %s106, 1
        %s270 = scalar_lea.sflag [#allocation8], %s269
        %s271 = sand.u32 %s106, 1
        %s272 = smul.addr %s271, 8
        %s273 = scalar_lea.vmem [#allocation7], %s272
        // Predicated region
        $region41: #{tpu_custom_call.1} parent=31 // pred_check
          %p274 = pneg %p119
        $region42: #{tpu_custom_call.1} parent=31 // pred_check_branch
          %276 = sbr.rel (%p274) target = $region44
        $region43: #{tpu_custom_call.1} parent=31 // pred_region
          %278 = dma.done %s270, 128
        $region44: #{tpu_custom_call.1} parent=31 // pred_fallthru
          _
        %279 = sfence
        %p280 = pneg %p57
        %p281 = pneg %p54
        %s282 = sand.u32 %s78, 1
        %s283 = scalar_lea.sflag [#allocation3], %s282
        %s284 = sand.u32 %s78, 1
        %s285 = smul.addr %s284, 8
        %s286 = scalar_lea.vmem [#allocation6], %s285
        %p287 = pneg %p91
        %p288 = pneg %p88
        %s289 = sand.u32 %s106, 1
        %s290 = scalar_lea.sflag [#allocation8], %s289
        %s291 = sand.u32 %s106, 1
        %s292 = smul.addr %s291, 8
        %s293 = scalar_lea.vmem [#allocation7], %s292
        %p294 = pneg %p119
        %p295 = pneg %p116
        %p296 = pneg %p147
        %p297 = pneg %p144
        %s298 = sand.u32 %s134, 1
        %s299 = scalar_lea.sflag [#allocation4], %s298
        %s300 = sand.u32 %s134, 1
        %s301 = smul.addr %s300, 8
        %s302 = scalar_lea.vmem [#allocation9], %s301
        %p303 = pneg %p175
        %p304 = pneg %p172
        %s305 = sand.u32 %s162, 1
        %s306 = scalar_lea.sflag [#allocation11], %s305
        %s307 = sand.u32 %s162, 1
        %s308 = smul.addr %s307, 8
        %s309 = scalar_lea.vmem [#allocation10], %s308
        %s310 = ssub.s32 %s34, 1
        %p311 = scmp.gt.s32.totalorder %s310, 0
        %s312 = scalar_select %p311, %s310, 0
        %v313 = vld [vmem:[%s273] sm:$0xff]
        %s314 = sld [smem:[#allocation2 + $0x4]]
        %v315 = vstv %s314
        %v316 = vmul.f32 %v315, %v313
        %s317 = sld [smem:[#allocation2 + $0x3]]
        %v318 = vrot.slane %v313, 7
        %v319 = vstv %s317
        %v320 = vmul.f32 %v319, %v318
        %v321 = vadd.f32 %v316, %v320
        %s322 = sld [smem:[#allocation2 + $0x2]]
        %v323 = vrot.slane %v313, 6
        %v324 = vstv %s322
        %v325 = vmul.f32 %v324, %v323
        %v326 = vadd.f32 %v321, %v325
        %s327 = sld [smem:[#allocation2 + $0x1]]
        %v328 = vrot.slane %v313, 5
        %v329 = vstv %s327
        %v330 = vmul.f32 %v329, %v328
        %v331 = vadd.f32 %v326, %v330
        %s332 = sld [smem:[#allocation2]]
        %v333 = vrot.slane %v313, 4
        %v334 = vstv %s332
        %v335 = vmul.f32 %v334, %v333
        %v336 = vadd.f32 %v331, %v335
        %v337 = vsub.f32 %v313, %v336
        %v338 = vadd.f32 %v337, 0.001
        %vm339 = vcmask 261120
        %340 = vst.msk [vmem:[%s302] sm:$0xff] %vm339, %v338
        %v341 = vsub.f32 %v336, 0.001
        %342 = vst.msk [vmem:[%s309] sm:$0xff] %vm339, %v341
        %v343 = vld [vmem:[%s263] sm:$0xff]
        %v344 = vperm.slane %v313, 0
        %p345 = scmp.gt.s32.totalorder %s34, 0
        %s346 = scalar_select %p345, 1, 0
        %v347 = vstv %s346
        %vm348 = vcmp.eq.s32.totalorder %v347, 1
        %v349 = vsel %vm348, %v343, %v344
        %s350 = sld [smem:[#allocation2]]
        %v351 = vstv %s350
        %v352 = vmul.f32 %v351, %v349
        %v353 = vmul.f32 %v351, %v313
        %s354 = sld [smem:[#allocation2 + $0x1]]
        %v355 = vstv %s354
        %v356 = vmul.f32 %v355, %v349
        %v357 = vmul.f32 %v355, %v313
        %vm360 = vcmask 1046528
        %v361 = vrot.slane %v356, 1
        %v362 = vrot.slane %v357, 1
        %v363 = vsel %vm360, %v361, %v362
        %v366 = vadd.f32 %v352, %v363
        %v367 = vadd.f32 %v353, %v362
        %s368 = sld [smem:[#allocation2 + $0x2]]
        %v369 = vstv %s368
        %v370 = vmul.f32 %v369, %v349
        %v371 = vmul.f32 %v369, %v313
        %vm374 = vcmask 1045504
        %v375 = vrot.slane %v370, 2
        %v376 = vrot.slane %v371, 2
        %v377 = vsel %vm374, %v375, %v376
        %v380 = vadd.f32 %v366, %v377
        %v381 = vadd.f32 %v367, %v376
        %s382 = sld [smem:[#allocation2 + $0x3]]
        %v383 = vstv %s382
        %v384 = vmul.f32 %v383, %v349
        %v385 = vmul.f32 %v383, %v313
        %vm388 = vcmask 1044480
        %v389 = vrot.slane %v384, 3
        %v390 = vrot.slane %v385, 3
        %v391 = vsel %vm388, %v389, %v390
        %v394 = vadd.f32 %v380, %v391
        %v395 = vadd.f32 %v381, %v390
        %s396 = sld [smem:[#allocation2 + $0x4]]
        %v397 = vstv %s396
        %v398 = vmul.f32 %v397, %v313
        %v400 = vrot.slane %v398, 4
        %v402 = vadd.f32 %v394, %v400
        %v403 = vadd.f32 %v395, %v400
        %vm406 = vcmask 1043456
        %v407 = vrot.slane %v402, 4
        %v408 = vrot.slane %v403, 4
        %v409 = vsel %vm406, %v407, %v408
        %v411 = vsub.f32 %v313, %v409
        %v412 = vadd.f32 %v411, 0.001
        %413 = vst.msk [vmem:[%s302] sm:$0xff] %vm339, %v412
        %v414 = vsub.f32 %v402, 0.001
        %v415 = vsub.f32 %v403, 0.001
        %vm416 = vcmask 261124
        %417 = vst.msk [vmem:[%s309 - $0x4] sm:$0xf0] %vm416, %v414
        %vm418 = vcmask 257024
        %419 = vst.msk [vmem:[%s309 + $0x4] sm:$0xf] %vm418, %v415
        %s420 = sand.u32 %s134, 1
        %s421 = scalar_lea.sflag [#allocation4], %s420
        %s422 = sand.u32 %s134, 1
        %s423 = smul.addr %s422, 8
        %s424 = scalar_lea.vmem [#allocation9], %s423
        %s425 = sand.u32 %s162, 1
        %s426 = scalar_lea.sflag [#allocation11], %s425
        %s427 = sand.u32 %s162, 1
        %s428 = smul.addr %s427, 8
        %s429 = scalar_lea.vmem [#allocation10], %s428
        // Predicated region
        $region45: #{tpu_custom_call.1} parent=31 // pred_check
          %p430 = pneg %p144
        $region46: #{tpu_custom_call.1} parent=31 // pred_check_branch
          %432 = sbr.rel (%p430) target = $region48
        $region47: #{tpu_custom_call.1} parent=31 // pred_region
          %434 = vsyncadd %s421, 0
          %s435 = sadd.s32 %s34, %s33
          %s436 = smul.addr %s435, 8
          %s437 = scalar_lea.hbm %s3, %s436
          %s439 = sshll.u32 %s424, 4
          %s440 = int_to_ptr.vmem [resolvable:$true] %s439
          %s441 = sshll.u32 %s437, 4
          %s442 = int_to_ptr.hbm [resolvable:$true] %s441
          %444 = dma.vmem_to_hbm [thread:$0]  %s440, 128, %s442, %s421
        $region48: #{tpu_custom_call.1} parent=31 // pred_fallthru
          _
        // Predicated region
        $region49: #{tpu_custom_call.1} parent=31 // pred_check
          %p445 = pneg %p172
        $region50: #{tpu_custom_call.1} parent=31 // pred_check_branch
          %447 = sbr.rel (%p445) target = $region52
        $region51: #{tpu_custom_call.1} parent=31 // pred_region
          %449 = vsyncadd %s426, 0
          %s450 = sadd.s32 %s34, %s33
          %s451 = smul.addr %s450, 8
          %s452 = scalar_lea.hbm %s4, %s451
          %s454 = sshll.u32 %s429, 4
          %s455 = int_to_ptr.vmem [resolvable:$true] %s454
          %s456 = sshll.u32 %s452, 4
          %s457 = int_to_ptr.hbm [resolvable:$true] %s456
          %459 = dma.vmem_to_hbm [thread:$0]  %s455, 128, %s457, %s426
        $region52: #{tpu_custom_call.1} parent=31 // pred_fallthru
          _
      $region32: #{tpu_custom_call.1} parent=5 // pred_fallthru
        _
      %p460 = scmp.le.s32.totalorder 2, %s24
      // Predicated region
      $region53: #{tpu_custom_call.1} parent=5 // pred_check
        %p461 = pneg %p460
      $region54: #{tpu_custom_call.1} parent=5 // pred_check_branch
        %463 = sbr.rel (%p461) target = $region56
      $region55: #{tpu_custom_call.1} parent=5 // pred_region
        %s464 = ssub.s32 %s24, 2
        // Predicated region
        $region57: #{tpu_custom_call.1} parent=55 // pred_check
          %p465 = pneg %p150
        $region58: #{tpu_custom_call.1} parent=55 // pred_check_branch
          %467 = sbr.rel (%p465) target = $region60
        $region59: #{tpu_custom_call.1} parent=55 // pred_region
          %s468 = sand.u32 %s135, 1
          %s469 = scalar_lea.sflag [#allocation4], %s468
          %s470 = sand.u32 %s135, 1
          %s471 = smul.addr %s470, 8
          %s472 = scalar_lea.vmem [#allocation9], %s471
          %474 = dma.done %s469, 128
        $region60: #{tpu_custom_call.1} parent=55 // pred_fallthru
          _
        // Predicated region
        $region61: #{tpu_custom_call.1} parent=55 // pred_check
          %p475 = pneg %p178
        $region62: #{tpu_custom_call.1} parent=55 // pred_check_branch
          %477 = sbr.rel (%p475) target = $region64
        $region63: #{tpu_custom_call.1} parent=55 // pred_region
          %s478 = sand.u32 %s163, 1
          %s479 = scalar_lea.sflag [#allocation11], %s478
          %s480 = sand.u32 %s163, 1
          %s481 = smul.addr %s480, 8
          %s482 = scalar_lea.vmem [#allocation10], %s481
          %484 = dma.done %s479, 128
        $region64: #{tpu_custom_call.1} parent=55 // pred_fallthru
          _
      $region56: #{tpu_custom_call.1} parent=5 // pred_fallthru
        _
    $region6: #{tpu_custom_call.1} parent=1 // loop_footer
      %s28 = sadd.s32 1, %s24
    $region7: #{tpu_custom_call.1} parent=1 // loop_footer_branch
      %23 = sbr.rel target = $region3
    $region8: #{tpu_custom_call.1} parent=1 // loop_exit
      _
    %485 = vsyncpa [#allocation3], 1
    %s486 = scalar_lea.sflag [#allocation3], 1
    %487 = vsyncpa %s486, 1
    %488 = vsyncpa [#allocation8], 1
    %s489 = scalar_lea.sflag [#allocation8], 1
    %490 = vsyncpa %s489, 1
    %491 = vsyncpa [#allocation4], 1
    %s492 = scalar_lea.sflag [#allocation4], 1
    %493 = vsyncpa %s492, 1
    %494 = vsyncpa [#allocation11], 1
    %s495 = scalar_lea.sflag [#allocation11], 1
    %496 = vsyncpa %s495, 1
    %497 = vsyncpa [#allocation5], 1
    %s498 = scalar_lea.sflag [#allocation5], 1
    %499 = vsyncpa %s498, 1

</llo_original>
